<compile_context>
chip_gen: v6e
topology: v6e:2x2x1
jax: 0.10.0
libtpu: 0.0.40
codegen_flags: <defaults>
</compile_context>

<pallas_src>
import functools
import math

import jax
import jax.numpy as jnp
from jax.experimental import pallas as pl
from jax.experimental.pallas import tpu as pltpu

LANES = 128
SUBLANES = 8
_ALIGN = SUBLANES * LANES  # 1024 elements per (8,128) tile


def _tpu_config():
    """Generation-dependent tile size / core split.

    v5e: 16 MiB scoped-VMEM default -> 2048-row tiles (6 MiB double-buffered).
    v6e/v7x: 32 MiB scoped default   -> 4096-row tiles (12 MiB double-buffered).
    Core split only on v7x (2 TensorCores per device); on single-TC chips a
    2-way split is a serial loop that forces masking + a duplicate block read.
    """
    kind = ""
    try:
        kind = (getattr(jax.devices()[0], "device_kind", "") or "").lower()
    except Exception:
        pass
    is_v5e = ("v5 lite" in kind) or ("v5e" in kind) or ("v5lite" in kind)
    is_v7 = "7" in kind
    tile_r = 2048 if is_v5e else 4096
    n_split = 2 if is_v7 else 1
    return tile_r, n_split


def _off_loss_kernel(p_ref, t_ref, w_ref, loss_out, wsum_out,
                     loss_acc, wsum_acc, *,
                     tile_r, n_inner, n_rows, first_masked_block):
    c = pl.program_id(0)   # core-split axis (size 1 on single-TC chips)
    i = pl.program_id(1)   # streaming reduction axis

    @pl.when(i == 0)
    def _():
        loss_acc[...] = jnp.zeros_like(loss_acc)
        wsum_acc[...] = jnp.zeros_like(wsum_acc)

    p = p_ref[...].astype(jnp.float32)
    t = t_ref[...].astype(jnp.float32)
    w = w_ref[...].astype(jnp.float32)

    d = p - t
    ad = jnp.abs(d)
    # SmoothL1 with beta = 1.0 (PyTorch default): 0.5*d^2 if |d| < 1 else |d| - 0.5
    sl1 = jnp.where(ad < 1.0, 0.5 * d * d, ad - 0.5)
    wl = w * sl1

    def accumulate(wl_v, w_v):
        # vreg-shaped (8,128) partial sums: pure lane/sublane-parallel VPU adds;
        # the single cross-lane reduction happens once, in the JAX wrapper.
        loss_acc[...] += jnp.sum(
            wl_v.reshape(tile_r // SUBLANES, SUBLANES, LANES), axis=0)
        wsum_acc[...] += jnp.sum(
            w_v.reshape(tile_r // SUBLANES, SUBLANES, LANES), axis=0)

    if first_masked_block is None:
        # Every block in the grid is a full, real block: no mask anywhere.
        accumulate(wl, w)
    else:
        blk = c * n_inner + i

        @pl.when(blk < first_masked_block)
        def _():
            accumulate(wl, w)            # fast unmasked path (all but <=2 blocks)

        @pl.when(blk >= first_masked_block)
        def _():
            # Partial last real block and/or clamped overhang duplicate: zero
            # every row past the real end of the slab.  Masking `wl` itself
            # (not only `w`) discards any NaN/Inf in the unspecified OOB data.
            rows = blk * tile_r + jax.lax.broadcasted_iota(
                jnp.int32, (tile_r, LANES), 0)
            valid = rows < n_rows
            accumulate(jnp.where(valid, wl, 0.0), jnp.where(valid, w, 0.0))

    @pl.when(i == pl.num_programs(1) - 1)
    def _():
        loss_out[0] = loss_acc[...]
        wsum_out[0] = wsum_acc[...]


@functools.partial(jax.jit, static_argnames=("tile_r", "n_split"))
def _off_loss_impl(pred, target, weight, factor, *, tile_r, n_split):
    assert pred.shape == target.shape == weight.shape
    total = math.prod(pred.shape)

    pf = pred.reshape(-1)
    tf = target.reshape(-1)
    wf = weight.reshape(-1)

    n_rows = (total // _ALIGN) * SUBLANES          # rows in the aligned prefix
    aligned = n_rows * LANES

    loss_sum = jnp.float32(0.0)
    w_sum = jnp.float32(0.0)

    if n_rows > 0:
        if aligned == total:
            # Pure reshape — no copy, no padding.
            p2 = pf.reshape(n_rows, LANES)
            t2 = tf.reshape(n_rows, LANES)
            w2 = wf.reshape(n_rows, LANES)
        else:
            # TODO(synk): the prefix slice may still materialize a copy in XLA;
            # it only triggers when numel is not (8*128)-aligned, and it avoids
            # the previous full-array jnp.pad read+write on all three inputs.
            p2 = pf[:aligned].reshape(n_rows, LANES)
            t2 = tf[:aligned].reshape(n_rows, LANES)
            w2 = wf[:aligned].reshape(n_rows, LANES)

        tr = min(tile_r, n_rows)                   # both are multiples of 8
        num_row_blocks = (n_rows + tr - 1) // tr
        n_inner = (num_row_blocks + n_split - 1) // n_split
        total_blocks = n_split * n_inner

        # First block index that needs the row mask (partial last real block
        # and/or clamped overhang duplicates).  None => no mask anywhere.
        first_masked = num_row_blocks - 1 if (n_rows % tr) else num_row_blocks
        first_masked_block = first_masked if total_blocks > first_masked else None

        def in_map(c, i):
            # Clamp so the index map never points past the last real block;
            # the in-kernel row mask zeroes any duplicated contribution.
            return (jnp.minimum(c * n_inner + i, num_row_blocks - 1), 0)

        kernel = functools.partial(
            _off_loss_kernel, tile_r=tr, n_inner=n_inner, n_rows=n_rows,
            first_masked_block=first_masked_block)

        bytes_in = aligned * (pf.dtype.itemsize + tf.dtype.itemsize
                              + wf.dtype.itemsize)
        cost = pl.CostEstimate(
            flops=10 * aligned,
            transcendentals=0,
            bytes_accessed=bytes_in + 2 * n_split * SUBLANES * LANES * 4)

        # On v7x use CORE_PARALLEL so the leading axis is guaranteed to shard
        # across the two TensorCores; single-TC chips keep a plain serial axis.
        lead_sem = (getattr(pltpu, "CORE_PARALLEL", "parallel")
                    if n_split > 1 else "arbitrary")

        loss_part, wsum_part = pl.pallas_call(
            kernel,
            out_shape=(
                jax.ShapeDtypeStruct((n_split, SUBLANES, LANES), jnp.float32),
                jax.ShapeDtypeStruct((n_split, SUBLANES, LANES), jnp.float32),
            ),
            grid_spec=pltpu.PrefetchScalarGridSpec(
                num_scalar_prefetch=0,
                grid=(n_split, n_inner),
                in_specs=[
                    pl.BlockSpec((tr, LANES), in_map),
                    pl.BlockSpec((tr, LANES), in_map),
                    pl.BlockSpec((tr, LANES), in_map),
                ],
                out_specs=(
                    pl.BlockSpec((1, SUBLANES, LANES), lambda c, i: (c, 0, 0)),
                    pl.BlockSpec((1, SUBLANES, LANES), lambda c, i: (c, 0, 0)),
                ),
                scratch_shapes=[
                    pltpu.VMEM((SUBLANES, LANES), jnp.float32),
                    pltpu.VMEM((SUBLANES, LANES), jnp.float32),
                ],
            ),
            compiler_params=pltpu.CompilerParams(
                dimension_semantics=(lead_sem, "arbitrary")),
            cost_estimate=cost,
        )(p2, t2, w2)

        loss_sum = loss_sum + jnp.sum(loss_part)
        w_sum = w_sum + jnp.sum(wsum_part)

    if aligned != total:
        # Ragged tail (< 1024 elements): fold in with plain jnp — trivial cost,
        # and it keeps the kernel inputs copy-free for aligned shapes.
        tp = pf[aligned:].astype(jnp.float32)
        tt = tf[aligned:].astype(jnp.float32)
        tw = wf[aligned:].astype(jnp.float32)
        td = tp - tt
        tad = jnp.abs(td)
        tsl1 = jnp.where(tad < 1.0, 0.5 * td * td, tad - 0.5)
        loss_sum = loss_sum + jnp.sum(tw * tsl1)
        w_sum = w_sum + jnp.sum(tw)

    denom = jnp.maximum(jnp.float32(1.0), w_sum)   # max(1.0, weight.sum())
    return loss_sum / denom * factor


def off_loss(pred, target, weight, factor=1.0):
    """loss = (weight * SmoothL1(pred, target)).sum() / max(1.0, weight.sum()) * factor"""
    tile_r, n_split = _tpu_config()
    return _off_loss_impl(pred, target, weight,
                          jnp.asarray(factor, jnp.float32),
                          tile_r=tile_r, n_split=n_split)


if __name__ == "__main__":
    key = jax.random.PRNGKey(0)
    k1, k2, k3 = jax.random.split(key, 3)
    shape = (2, 4, 16, 16)   # small NCHW, consistent with a dense offset head
    pred = jax.random.normal(k1, shape, dtype=jnp.float32)
    target = jax.random.normal(k2, shape, dtype=jnp.float32)
    weight = jax.random.uniform(k3, shape, dtype=jnp.float32)

    out = off_loss(pred, target, weight, factor=1.0)
    out = jax.block_until_ready(out)

    # Reference in plain JAX (SmoothL1Loss beta=1, reduction='none').
    d = pred - target
    ad = jnp.abs(d)
    sl1 = jnp.where(ad < 1.0, 0.5 * d * d, ad - 0.5)
    ref = jnp.sum(weight * sl1) / jnp.maximum(1.0, jnp.sum(weight)) * 1.0
    assert jnp.allclose(out, ref, rtol=1e-5, atol=1e-5), (out, ref)

    print("KERNEL_OK")
</pallas_src>

<mosaic_0001>
module attributes {stable_mosaic.version = 11 : i64} {
  func.func @_off_loss_kernel(%arg0: i32, %arg1: i32, %arg2: memref<16x128xf32, #tpu.memory_space<vmem>>, %arg3: memref<16x128xf32, #tpu.memory_space<vmem>>, %arg4: memref<16x128xf32, #tpu.memory_space<vmem>>, %arg5: memref<1x8x128xf32, #tpu.memory_space<vmem>>, %arg6: memref<1x8x128xf32, #tpu.memory_space<vmem>>, %arg7: memref<8x128xf32, #tpu.memory_space<vmem>>, %arg8: memref<8x128xf32, #tpu.memory_space<vmem>>) attributes {dimension_semantics = [#tpu.dimension_semantics<arbitrary>, #tpu.dimension_semantics<arbitrary>], iteration_bounds = array<i64: 1, 1>, scalar_prefetch = 0 : i64, scratch_operands = 2 : i64, tpu.core_type = #tpu.core_type<tc>, window_params = [{transform_indices = @transform_0, window_bounds = array<i64: 16, 128>}, {transform_indices = @transform_1, window_bounds = array<i64: 16, 128>}, {transform_indices = @transform_2, window_bounds = array<i64: 16, 128>}, {transform_indices = @transform_3, window_bounds = array<i64: 1, 8, 128>}, {transform_indices = @transform_4, window_bounds = array<i64: 1, 8, 128>}]} {
    %c0_i32 = arith.constant 0 : i32
    %0 = arith.cmpi eq, %arg1, %c0_i32 : i32
    %1 = arith.extui %0 : i1 to i32
    %c0_i32_0 = arith.constant 0 : i32
    %2 = arith.cmpi ne, %1, %c0_i32_0 : i32
    scf.if %2 {
      %cst_20 = arith.constant 0.000000e+00 : f32
      %30 = vector.broadcast %cst_20 : f32 to vector<8x128xf32>
      %c0_21 = arith.constant 0 : index
      %c0_22 = arith.constant 0 : index
      %31 = vector.load %arg7[%c0_21, %c0_22] : memref<8x128xf32, #tpu.memory_space<vmem>>, vector<8x128xf32>
      tpu.vector_store %arg7[%c0_21, %c0_22], %30 {strides = array<i32>} : memref<8x128xf32, #tpu.memory_space<vmem>>, vector<8x128xf32>,
      %cst_23 = arith.constant 0.000000e+00 : f32
      %32 = vector.broadcast %cst_23 : f32 to vector<8x128xf32>
      %c0_24 = arith.constant 0 : index
      %c0_25 = arith.constant 0 : index
      %33 = vector.load %arg8[%c0_24, %c0_25] : memref<8x128xf32, #tpu.memory_space<vmem>>, vector<8x128xf32>
      tpu.vector_store %arg8[%c0_24, %c0_25], %32 {strides = array<i32>} : memref<8x128xf32, #tpu.memory_space<vmem>>, vector<8x128xf32>,
    } else {
    }
    %c0 = arith.constant 0 : index
    %c0_1 = arith.constant 0 : index
    %3 = vector.load %arg2[%c0, %c0_1] : memref<16x128xf32, #tpu.memory_space<vmem>>, vector<16x128xf32>
    %c0_2 = arith.constant 0 : index
    %c0_3 = arith.constant 0 : index
    %4 = vector.load %arg3[%c0_2, %c0_3] : memref<16x128xf32, #tpu.memory_space<vmem>>, vector<16x128xf32>
    %c0_4 = arith.constant 0 : index
    %c0_5 = arith.constant 0 : index
    %5 = vector.load %arg4[%c0_4, %c0_5] : memref<16x128xf32, #tpu.memory_space<vmem>>, vector<16x128xf32>
    %6 = arith.subf %3, %4 : vector<16x128xf32>
    %7 = math.absf %6 : vector<16x128xf32>
    %cst = arith.constant 1.000000e+00 : f32
    %8 = vector.broadcast %cst : f32 to vector<16x128xf32>
    %9 = arith.cmpf olt, %7, %8 : vector<16x128xf32>
    %cst_6 = arith.constant 5.000000e-01 : f32
    %10 = vector.broadcast %cst_6 : f32 to vector<16x128xf32>
    %11 = arith.mulf %10, %6 : vector<16x128xf32>
    %12 = arith.mulf %11, %6 : vector<16x128xf32>
    %cst_7 = arith.constant 5.000000e-01 : f32
    %13 = vector.broadcast %cst_7 : f32 to vector<16x128xf32>
    %14 = arith.subf %7, %13 : vector<16x128xf32>
    %15 = arith.select %9, %12, %14 : vector<16x128xi1>, vector<16x128xf32>
    %16 = arith.mulf %5, %15 : vector<16x128xf32>
    %c0_8 = arith.constant 0 : index
    %c0_9 = arith.constant 0 : index
    %17 = vector.load %arg7[%c0_8, %c0_9] : memref<8x128xf32, #tpu.memory_space<vmem>>, vector<8x128xf32>
    %18 = vector.shape_cast %16 : vector<16x128xf32> to vector<2x8x128xf32>
    %cst_10 = arith.constant dense<0.000000e+00> : vector<8x128xf32>
    %19 = vector.multi_reduction <add>, %18, %cst_10 [0] : vector<2x8x128xf32> to vector<8x128xf32>
    %20 = arith.addf %17, %19 : vector<8x128xf32>
    %c0_11 = arith.constant 0 : index
    %c0_12 = arith.constant 0 : index
    %21 = vector.load %arg7[%c0_11, %c0_12] : memref<8x128xf32, #tpu.memory_space<vmem>>, vector<8x128xf32>
    tpu.vector_store %arg7[%c0_11, %c0_12], %20 {strides = array<i32>} : memref<8x128xf32, #tpu.memory_space<vmem>>, vector<8x128xf32>,
    %c0_13 = arith.constant 0 : index
    %c0_14 = arith.constant 0 : index
    %22 = vector.load %arg8[%c0_13, %c0_14] : memref<8x128xf32, #tpu.memory_space<vmem>>, vector<8x128xf32>
    %23 = vector.shape_cast %5 : vector<16x128xf32> to vector<2x8x128xf32>
    %cst_15 = arith.constant dense<0.000000e+00> : vector<8x128xf32>
    %24 = vector.multi_reduction <add>, %23, %cst_15 [0] : vector<2x8x128xf32> to vector<8x128xf32>
    %25 = arith.addf %22, %24 : vector<8x128xf32>
    %c0_16 = arith.constant 0 : index
    %c0_17 = arith.constant 0 : index
    %26 = vector.load %arg8[%c0_16, %c0_17] : memref<8x128xf32, #tpu.memory_space<vmem>>, vector<8x128xf32>
    tpu.vector_store %arg8[%c0_16, %c0_17], %25 {strides = array<i32>} : memref<8x128xf32, #tpu.memory_space<vmem>>, vector<8x128xf32>,
    %c0_i32_18 = arith.constant 0 : i32
    %27 = arith.cmpi eq, %arg1, %c0_i32_18 : i32
    %28 = arith.extui %27 : i1 to i32
    %c0_i32_19 = arith.constant 0 : i32
    %29 = arith.cmpi ne, %28, %c0_i32_19 : i32
    scf.if %29 {
      %c0_20 = arith.constant 0 : index
      %c0_21 = arith.constant 0 : index
      %30 = vector.load %arg7[%c0_20, %c0_21] : memref<8x128xf32, #tpu.memory_space<vmem>>, vector<8x128xf32>
      %c0_22 = arith.constant 0 : index
      %c0_23 = arith.constant 0 : index
      %c0_24 = arith.constant 0 : index
      %31 = vector.load %arg5[%c0_22, %c0_23, %c0_24] : memref<1x8x128xf32, #tpu.memory_space<vmem>>, vector<1x8x128xf32>
      %32 = vector.shape_cast %31 : vector<1x8x128xf32> to vector<8x128xf32>
      %33 = vector.shape_cast %30 : vector<8x128xf32> to vector<1x8x128xf32>
      tpu.vector_store %arg5[%c0_22, %c0_23, %c0_24], %33 {strides = array<i32>} : memref<1x8x128xf32, #tpu.memory_space<vmem>>, vector<1x8x128xf32>,
      %c0_25 = arith.constant 0 : index
      %c0_26 = arith.constant 0 : index
      %34 = vector.load %arg8[%c0_25, %c0_26] : memref<8x128xf32, #tpu.memory_space<vmem>>, vector<8x128xf32>
      %c0_27 = arith.constant 0 : index
      %c0_28 = arith.constant 0 : index
      %c0_29 = arith.constant 0 : index
      %35 = vector.load %arg6[%c0_27, %c0_28, %c0_29] : memref<1x8x128xf32, #tpu.memory_space<vmem>>, vector<1x8x128xf32>
      %36 = vector.shape_cast %35 : vector<1x8x128xf32> to vector<8x128xf32>
      %37 = vector.shape_cast %34 : vector<8x128xf32> to vector<1x8x128xf32>
      tpu.vector_store %arg6[%c0_27, %c0_28, %c0_29], %37 {strides = array<i32>} : memref<1x8x128xf32, #tpu.memory_space<vmem>>, vector<1x8x128xf32>,
    } else {
    }
    return
  }
  func.func @transform_0(%arg0: i32, %arg1: i32) -> (i32, i32) {
    %c1_i32 = arith.constant 1 : i32
    %0 = arith.muli %arg0, %c1_i32 : i32
    %1 = arith.addi %0, %arg1 : i32
    %c0_i32 = arith.constant 0 : i32
    %2 = arith.minsi %1, %c0_i32 : i32
    %c0_i32_0 = arith.constant 0 : i32
    %c0_i32_1 = arith.constant 0 : i32
    return %2, %c0_i32_0 : i32, i32
  }
  func.func @transform_1(%arg0: i32, %arg1: i32) -> (i32, i32) {
    %c1_i32 = arith.constant 1 : i32
    %0 = arith.muli %arg0, %c1_i32 : i32
    %1 = arith.addi %0, %arg1 : i32
    %c0_i32 = arith.constant 0 : i32
    %2 = arith.minsi %1, %c0_i32 : i32
    %c0_i32_0 = arith.constant 0 : i32
    %c0_i32_1 = arith.constant 0 : i32
    return %2, %c0_i32_0 : i32, i32
  }
  func.func @transform_2(%arg0: i32, %arg1: i32) -> (i32, i32) {
    %c1_i32 = arith.constant 1 : i32
    %0 = arith.muli %arg0, %c1_i32 : i32
    %1 = arith.addi %0, %arg1 : i32
    %c0_i32 = arith.constant 0 : i32
    %2 = arith.minsi %1, %c0_i32 : i32
    %c0_i32_0 = arith.constant 0 : i32
    %c0_i32_1 = arith.constant 0 : i32
    return %2, %c0_i32_0 : i32, i32
  }
  func.func @transform_3(%arg0: i32, %arg1: i32) -> (i32, i32, i32) {
    %c0_i32 = arith.constant 0 : i32
    %c0_i32_0 = arith.constant 0 : i32
    %c0_i32_1 = arith.constant 0 : i32
    return %arg0, %c0_i32, %c0_i32_0 : i32, i32, i32
  }
  func.func @transform_4(%arg0: i32, %arg1: i32) -> (i32, i32, i32) {
    %c0_i32 = arith.constant 0 : i32
    %c0_i32_0 = arith.constant 0 : i32
    %c0_i32_1 = arith.constant 0 : i32
    return %arg0, %c0_i32, %c0_i32_0 : i32, i32, i32
  }
}

</mosaic_0001>

<llo_original>
// kernel: _off_loss_impl.1
$region0: #{_off_loss_impl.1}
  #allocation0 [shape = 'u32[]', space=smem, size = 0x4, offset = 0x4, fixed_abs, tag = 'smem constant byte address 0x4 - core index']
  #allocation1 [shape = 'u32[144,128]{1,0:T(1,128)}', space=vmem, size = 0x12000, scoped, tag = 'internal scratch']
  #allocation2 [shape = 'f32[8,128]{1,0:T(8,128)}', space=vmem, size = 0x1000, scoped, tag = 'scratch operand']
  #allocation3 [shape = 'f32[8,128]{1,0:T(8,128)}', space=vmem, size = 0x1000, scoped, tag = 'scratch operand']
  %s0 = inlined_call_operand.vmem [shape: f32[16,128], index: 0, kind: input, shape index: {}]
  %s1 = inlined_call_operand.vmem [shape: f32[16,128], index: 1, kind: input, shape index: {}]
  %s2 = inlined_call_operand.vmem [shape: f32[16,128], index: 2, kind: input, shape index: {}]
  %s3 = inlined_call_operand.vmem [shape: f32[1,8,128], index: 3, kind: output, shape index: {0}]
  %s4 = inlined_call_operand.vmem [shape: f32[1,8,128], index: 4, kind: output, shape index: {1}]
  %5 = xla_tuple %s3, %s4
  %s6 = sld [smem:[#allocation0]]
  $region38: #{_off_loss_impl.1} parent=0
    _
  %s8 = ssub.s32 1, %s6
  %s9 = scalar_select 0, %s8, %s6
  // Predicated region
  $region2: #{_off_loss_impl.1} parent=0 // pred_check
    _
  $region3: #{_off_loss_impl.1} parent=0 // pred_check_branch
    %11 = sbr.rel (0) target = $region5
  $region4: #{_off_loss_impl.1} parent=0 // pred_region
    %s12 = sadd.s32 0, 0
    %p13 = scmp.lt.s32.totalorder %s12, 0
    %s14 = scalar_select %p13, %s12, 0
    %s15 = smul.u32 2, %s14
    %p16 = scmp.lt.s32.totalorder %s15, 1
    %s17 = scalar_select %p16, %s15, 1
    %s18 = smul.addr %s17, 8
    %s19 = scalar_lea.vmem %s0, %s18
    %s20 = sadd.s32 0, 0
    %p21 = scmp.lt.s32.totalorder %s20, 0
    %s22 = scalar_select %p21, %s20, 0
    %s23 = smul.u32 2, %s22
  $region5: #{_off_loss_impl.1} parent=0 // pred_fallthru
    _
  // Predicated region
  $region6: #{_off_loss_impl.1} parent=0 // pred_check
    _
  $region7: #{_off_loss_impl.1} parent=0 // pred_check_branch
    %25 = sbr.rel (0) target = $region9
  $region8: #{_off_loss_impl.1} parent=0 // pred_region
    %s26 = sadd.s32 0, 0
    %p27 = scmp.lt.s32.totalorder %s26, 0
    %s28 = scalar_select %p27, %s26, 0
    %s29 = smul.u32 2, %s28
    %p30 = scmp.lt.s32.totalorder %s29, 1
    %s31 = scalar_select %p30, %s29, 1
    %s32 = smul.addr %s31, 8
    %s33 = scalar_lea.vmem %s1, %s32
    %s34 = sadd.s32 0, 0
    %p35 = scmp.lt.s32.totalorder %s34, 0
    %s36 = scalar_select %p35, %s34, 0
    %s37 = smul.u32 2, %s36
  $region9: #{_off_loss_impl.1} parent=0 // pred_fallthru
    _
  // Predicated region
  $region10: #{_off_loss_impl.1} parent=0 // pred_check
    _
  $region11: #{_off_loss_impl.1} parent=0 // pred_check_branch
    %39 = sbr.rel (0) target = $region13
  $region12: #{_off_loss_impl.1} parent=0 // pred_region
    %s40 = sadd.s32 0, 0
    %p41 = scmp.lt.s32.totalorder %s40, 0
    %s42 = scalar_select %p41, %s40, 0
    %s43 = smul.u32 2, %s42
    %p44 = scmp.lt.s32.totalorder %s43, 1
    %s45 = scalar_select %p44, %s43, 1
    %s46 = smul.addr %s45, 8
    %s47 = scalar_lea.vmem %s2, %s46
    %s48 = sadd.s32 0, 0
    %p49 = scmp.lt.s32.totalorder %s48, 0
    %s50 = scalar_select %p49, %s48, 0
    %s51 = smul.u32 2, %s50
  $region13: #{_off_loss_impl.1} parent=0 // pred_fallthru
    _
  %s52 = sadd.s32 0, 0
  %p53 = scmp.lt.s32.totalorder %s52, 0
  %s54 = scalar_select %p53, %s52, 0
  %s55 = smul.u32 2, %s54
  %p56 = scmp.lt.s32.totalorder %s55, 1
  %s57 = scalar_select %p56, %s55, 1
  %s58 = smul.addr %s57, 8
  %s59 = scalar_lea.vmem %s0, %s58
  %s60 = sadd.s32 0, 0
  %p61 = scmp.lt.s32.totalorder %s60, 0
  %s62 = scalar_select %p61, %s60, 0
  %s63 = smul.u32 2, %s62
  %p64 = scmp.lt.s32.totalorder %s63, 1
  %s65 = scalar_select %p64, %s63, 1
  %s66 = smul.addr %s65, 8
  %s67 = scalar_lea.vmem %s1, %s66
  %s68 = sadd.s32 0, 0
  %p69 = scmp.lt.s32.totalorder %s68, 0
  %s70 = scalar_select %p69, %s68, 0
  %s71 = smul.u32 2, %s70
  %p72 = scmp.lt.s32.totalorder %s71, 1
  %s73 = scalar_select %p72, %s71, 1
  %s74 = smul.addr %s73, 8
  %s75 = scalar_lea.vmem %s2, %s74
  %s76 = sadd.s32 0, 0
  %p77 = scmp.lt.s32.totalorder %s76, 0
  %s78 = scalar_select %p77, %s76, 0
  %s79 = smul.u32 2, %s78
  %p80 = scmp.lt.s32.totalorder %s79, 1
  %s81 = scalar_select %p80, %s79, 1
  %s82 = smul.addr %s81, 8
  %s83 = scalar_lea.vmem %s0, %s82
  %s84 = sadd.s32 0, 0
  %p85 = scmp.lt.s32.totalorder %s84, 0
  %s86 = scalar_select %p85, %s84, 0
  %s87 = smul.u32 2, %s86
  %s88 = sadd.s32 0, 0
  %p89 = scmp.lt.s32.totalorder %s88, 0
  %s90 = scalar_select %p89, %s88, 0
  %s91 = smul.u32 2, %s90
  %p92 = scmp.lt.s32.totalorder %s91, 1
  %s93 = scalar_select %p92, %s91, 1
  %s94 = smul.addr %s93, 8
  %s95 = scalar_lea.vmem %s1, %s94
  %s96 = sadd.s32 0, 0
  %p97 = scmp.lt.s32.totalorder %s96, 0
  %s98 = scalar_select %p97, %s96, 0
  %s99 = smul.u32 2, %s98
  %s100 = sadd.s32 0, 0
  %p101 = scmp.lt.s32.totalorder %s100, 0
  %s102 = scalar_select %p101, %s100, 0
  %s103 = smul.u32 2, %s102
  %p104 = scmp.lt.s32.totalorder %s103, 1
  %s105 = scalar_select %p104, %s103, 1
  %s106 = smul.addr %s105, 8
  %s107 = scalar_lea.vmem %s2, %s106
  %s108 = sadd.s32 0, 0
  %p109 = scmp.lt.s32.totalorder %s108, 0
  %s110 = scalar_select %p109, %s108, 0
  %s111 = smul.u32 2, %s110
  %p112 = scmp.eq.s32.totalorder 0, 0
  // Predicated region
  $region14: #{_off_loss_impl.1} parent=0 // pred_check
    %p113 = pneg %p112
  $region15: #{_off_loss_impl.1} parent=0 // pred_check_branch
    %115 = sbr.rel (%p113) target = $region17
  $region16: #{_off_loss_impl.1} parent=0 // pred_region
    %116 = vst [vmem:[#allocation2] sm:$0xff] 0.0
    %117 = vst [vmem:[#allocation3] sm:$0xff] 0.0
  $region17: #{_off_loss_impl.1} parent=0 // pred_fallthru
    _
  %v118 = vld [vmem:[%s83] sm:$0xff]
  %v119 = vld [vmem:[%s83 + $0x8] sm:$0xff]
  %v120 = vld [vmem:[%s95] sm:$0xff]
  %v121 = vld [vmem:[%s95 + $0x8] sm:$0xff]
  %v122 = vld [vmem:[%s107] sm:$0xff]
  %v123 = vld [vmem:[%s107 + $0x8] sm:$0xff]
  %v124 = vsub.f32 %v118, %v120
  %v125 = vsub.f32 %v119, %v121
  %v126 = vand.u32 2147483647, %v124
  %v127 = vand.u32 2147483647, %v125
  %vm128 = vcmp.lt.f32.partialorder %v126, 1.0
  %vm129 = vcmp.lt.f32.partialorder %v127, 1.0
  %v130 = vmul.f32 %v124, 0.5
  %v131 = vmul.f32 %v125, 0.5
  %v132 = vmul.f32 %v130, %v124
  %v133 = vmul.f32 %v131, %v125
  %v134 = vsub.f32 %v126, 0.5
  %v135 = vsub.f32 %v127, 0.5
  %v136 = vsel %vm128, %v132, %v134
  %v137 = vsel %vm129, %v133, %v135
  %v138 = vmul.f32 %v122, %v136
  %v139 = vmul.f32 %v123, %v137
  %v140 = vld [vmem:[#allocation2] sm:$0xff]
  %v141 = vadd.f32 %v138, %v139
  %v142 = vadd.f32 %v140, %v141
  %143 = vst [vmem:[#allocation2] sm:$0xff] %v142
  %v144 = vld [vmem:[#allocation3] sm:$0xff]
  %v145 = vadd.f32 %v122, %v123
  %v146 = vadd.f32 %v144, %v145
  %147 = vst [vmem:[#allocation3] sm:$0xff] %v146
  // Predicated region
  $region18: #{_off_loss_impl.1} parent=0 // pred_check
    %p148 = pneg %p112
  $region19: #{_off_loss_impl.1} parent=0 // pred_check_branch
    %150 = sbr.rel (%p148) target = $region21
  $region20: #{_off_loss_impl.1} parent=0 // pred_region
    %v151 = vld [vmem:[#allocation2] sm:$0xff]
    %152 = vst [vmem:[%s3] sm:$0xff] %v151
    %v153 = vld [vmem:[#allocation3] sm:$0xff]
    %154 = vst [vmem:[%s4] sm:$0xff] %v153
  $region21: #{_off_loss_impl.1} parent=0 // pred_fallthru
    _
  // Predicated region
  $region22: #{_off_loss_impl.1} parent=0 // pred_check
    _
  $region23: #{_off_loss_impl.1} parent=0 // pred_check_branch
    %156 = sbr.rel (0) target = $region25
  $region24: #{_off_loss_impl.1} parent=0 // pred_region
    _
  $region25: #{_off_loss_impl.1} parent=0 // pred_fallthru
    _
  // Predicated region
  $region26: #{_off_loss_impl.1} parent=0 // pred_check
    _
  $region27: #{_off_loss_impl.1} parent=0 // pred_check_branch
    %158 = sbr.rel (0) target = $region29
  $region28: #{_off_loss_impl.1} parent=0 // pred_region
    _
  $region29: #{_off_loss_impl.1} parent=0 // pred_fallthru
    _
  // Predicated region
  $region30: #{_off_loss_impl.1} parent=0 // pred_check
    _
  $region31: #{_off_loss_impl.1} parent=0 // pred_check_branch
    %160 = sbr.rel (0) target = $region33
  $region32: #{_off_loss_impl.1} parent=0 // pred_region
    _
  $region33: #{_off_loss_impl.1} parent=0 // pred_fallthru
    _
  // Predicated region
  $region34: #{_off_loss_impl.1} parent=0 // pred_check
    _
  $region35: #{_off_loss_impl.1} parent=0 // pred_check_branch
    %162 = sbr.rel (0) target = $region37
  $region36: #{_off_loss_impl.1} parent=0 // pred_region
    _
  $region37: #{_off_loss_impl.1} parent=0 // pred_fallthru
    _

</llo_original>
